<compile_context>
chip_gen: v5e
topology: v5e:2x2
jax: 0.10.0
libtpu: 0.0.40
codegen_flags: <defaults>
</compile_context>

<pallas_src>
import math
import functools

import jax
import jax.numpy as jnp
from jax import lax
from jax.experimental import pallas as pl
from jax.experimental.pallas import tpu as pltpu


def _round_up(v, m):
    return -(-v // m) * m


def _tile_and_pad(dim, target, align):
    """Pick a tile (multiple of `align`, <= ~round_up(target, align)) and the padded dim it divides."""
    target = max(align, (target // align) * align)
    num_tiles = max(1, -(-dim // target))
    tile = _round_up(-(-dim // num_tiles), align)
    return tile, num_tiles * tile


# ---------------------------------------------------------------------------
# Row L2 normalization for x (F.normalize(dim=1)) — tiny memory-bound pass.
# ---------------------------------------------------------------------------
def _row_l2_normalize_kernel(a_ref, o_ref):
    a = a_ref[...].astype(jnp.float32)
    sumsq = jnp.sum(a * a, axis=1, keepdims=True)
    # F.normalize: v / max(||v||, 1e-12)  ==  v * rsqrt(max(||v||^2, 1e-24))
    o_ref[...] = (a * lax.rsqrt(jnp.maximum(sumsq, 1e-24))).astype(o_ref.dtype)


def row_l2_normalize(a, out_dtype, *, row_tile):
    R, D = a.shape
    assert R % row_tile == 0
    return pl.pallas_call(
        _row_l2_normalize_kernel,
        out_shape=jax.ShapeDtypeStruct((R, D), out_dtype),
        grid_spec=pltpu.PrefetchScalarGridSpec(
            num_scalar_prefetch=0,
            grid=(R // row_tile,),
            in_specs=[pl.BlockSpec((row_tile, D), lambda i: (i, 0))],
            out_specs=pl.BlockSpec((row_tile, D), lambda i: (i, 0)),
        ),
        compiler_params=pltpu.CompilerParams(
            dimension_semantics=("parallel",)),
    )(a)


# ---------------------------------------------------------------------------
# Main kernel: fused W-normalize + bf16 cosine matmul (MXU) + margin epilogue.
# ---------------------------------------------------------------------------
def _combined_margin_kernel(labels_ref, xn_ref, w_ref, out_ref, wn_scratch, *,
                            cos_m2, sin_m2, m2, m3, s, threshold,
                            ls_eps, easy_margin, out_features, tn):
    n = pl.program_id(0)   # class-tile index (outer)
    b = pl.program_id(1)   # batch-tile index (inner)

    # Normalize the raw f32 W tile into a resident bf16 scratch once per class
    # tile.  The W input block index only depends on n, so it changes exactly
    # when b wraps to 0; later b steps re-use the scratch (b axis = "arbitrary").
    @pl.when(b == 0)
    def _():
        w = w_ref[...].astype(jnp.float32)
        sumsq = jnp.sum(w * w, axis=1, keepdims=True)
        wn_scratch[...] = (w * lax.rsqrt(jnp.maximum(sumsq, 1e-24))
                           ).astype(wn_scratch.dtype)

    # cos_t = xn @ wn^T, contracting the lane (last) dim of BOTH operands so no
    # transpose of the weight tile is materialized. bf16 inputs, f32 accum.
    cos_t = lax.dot_general(
        xn_ref[...], wn_scratch[...],
        dimension_numbers=(((1,), (1,)), ((), ())),
        preferred_element_type=jnp.float32)            # (tb, tn) f32

    # One-hot match; class ids are offset by this tile's origin along N.
    labels_local = labels_ref[...] - n * tn                         # (tb, 1)
    col_ids = lax.broadcasted_iota(jnp.int32, cos_t.shape, 1)       # (tb, tn)
    match = col_ids == labels_local

    if ls_eps > 0.0:
        # Dense path (label smoothing blends every column).
        sin_t = jnp.sqrt(jnp.clip(1.0 - cos_t * cos_t, 0.0, 1.0))
        cos_tm = cos_t * cos_m2 - sin_t * sin_m2 - m3
        if easy_margin:
            cos_tm = jnp.where(cos_t > 0.0, cos_tm, cos_t)
        else:
            cos_tm = jnp.where(cos_t > threshold, cos_tm, cos_t - m3 - sin_t * m2)
        one_hot = (1.0 - ls_eps) * match.astype(jnp.float32) + ls_eps / out_features
        out = one_hot * cos_tm + (1.0 - one_hot) * cos_t
    else:
        # Slim path: the margin only changes the label column, so extract the
        # label-column cosine per row (masked row-reduce -> (tb, 1)), do the
        # margin math on that column only, then a single where-select.
        tgt = jnp.sum(jnp.where(match, cos_t, 0.0), axis=1, keepdims=True)
        sin_c = jnp.sqrt(jnp.clip(1.0 - tgt * tgt, 0.0, 1.0))
        cos_tm_c = tgt * cos_m2 - sin_c * sin_m2 - m3
        if easy_margin:
            cos_tm_c = jnp.where(tgt > 0.0, cos_tm_c, tgt)
        else:
            cos_tm_c = jnp.where(tgt > threshold, cos_tm_c, tgt - m3 - sin_c * m2)
        out = jnp.where(match, cos_tm_c, cos_t)

    out_ref[...] = (out * s).astype(out_ref.dtype)


def combined_margin(x, gt_labels, weight, *, m1=1.0, m=0.5, m3=0.0, s=64.0,
                    ls_eps=0.0, easy_margin=False,
                    tb_target=512, tn_target=2048,
                    matmul_dtype=jnp.bfloat16, out_dtype=jnp.float32):
    """x: (B, in_features) f32, gt_labels: (B,) int, weight: (out_features, in_features) f32."""
    assert m1 == 1.0, "m1 != 1.0 not supported (reference formula is cos(theta + m2))"
    B, D = x.shape
    N, D2 = weight.shape
    assert D == D2
    # TODO(synk): D (in_features) is kept untiled; fine for embedding dims <= ~2k.

    cos_m2 = math.cos(m)
    sin_m2 = math.sin(m)
    threshold = math.cos(math.pi - m)
    out_itemsize = jnp.dtype(out_dtype).itemsize

    # Generation-aware VMEM budget: ~40 MiB on v7x (64 MiB physical), ~80 MiB
    # on v5e/v6e (128 MiB physical).
    try:
        vmem_cap = int(pltpu.get_tpu_info().vmem_capacity_bytes)
    except Exception:
        vmem_cap = 64 * 1024 * 1024
    vmem_limit = max(32 * 1024 * 1024, min(vmem_cap * 5 // 8, 96 * 1024 * 1024))

    tb, B_pad = _tile_and_pad(B, tb_target, 8)

    def _vmem_estimate(tb_, tn_):
        w_raw = tn_ * D * 4 * 2            # raw f32 W tile, double-buffered
        w_nrm = tn_ * D * 2                # bf16 normalized-W scratch
        x_in = tb_ * D * 2 * 2             # bf16 x tile, double-buffered
        out_t = tb_ * tn_ * out_itemsize * 2
        tmp = tb_ * tn_ * 4 * 2            # f32 cos_t + one epilogue temporary
        return w_raw + w_nrm + x_in + out_t + tmp

    tgt = tn_target
    while True:
        tn, N_pad = _tile_and_pad(N, tgt, 128)
        if tn <= 128 or _vmem_estimate(tb, tn) <= int(0.8 * vmem_limit):
            break
        tgt = max(128, tgt // 2)

    # Pad B / N to tile multiples (zero rows/classes; sliced off at the end).
    if B_pad != B:
        x = jnp.pad(x, ((0, B_pad - B), (0, 0)))
        gt_labels = jnp.pad(gt_labels, (0, B_pad - B))
    if N_pad != N:
        weight = jnp.pad(weight, ((0, N_pad - N), (0, 0)))

    # Normalize x once (B*D is tiny) and cast to the MXU dtype.  Whole-array
    # tile when it comfortably fits VMEM, otherwise reuse the batch tile.
    row_tile = B_pad if B_pad * D * 6 <= (12 << 20) else tb
    xn = row_l2_normalize(x, matmul_dtype, row_tile=row_tile)
    labels2d = gt_labels.reshape(B_pad, 1).astype(jnp.int32)

    kernel = functools.partial(
        _combined_margin_kernel,
        cos_m2=cos_m2, sin_m2=sin_m2, m2=m, m3=m3, s=s,
        threshold=threshold, ls_eps=ls_eps, easy_margin=easy_margin,
        out_features=N, tn=tn,
    )

    cost = pl.CostEstimate(
        flops=2 * B_pad * N_pad * D,
        transcendentals=(B_pad * N_pad if ls_eps > 0.0
                         else B_pad * (N_pad // tn) + N_pad),
        bytes_accessed=(N_pad * D * 4 + B_pad * D * 2 + B_pad * 4
                        + B_pad * N_pad * out_itemsize),
    )

    # Grid = (N-tiles, B-tiles) with b innermost: the W tile (keyed only by n)
    # stays resident across the b sweep.  With the default tb_target=512 most
    # batches fit one b tile, so x/labels are DMA'd exactly once as well.
    out = pl.pallas_call(
        kernel,
        out_shape=jax.ShapeDtypeStruct((B_pad, N_pad), out_dtype),
        grid_spec=pltpu.PrefetchScalarGridSpec(
            num_scalar_prefetch=0,
            grid=(N_pad // tn, B_pad // tb),
            in_specs=[
                pl.BlockSpec((tb, 1), lambda n, b: (b, 0)),   # labels
                pl.BlockSpec((tb, D), lambda n, b: (b, 0)),   # normalized x (bf16)
                pl.BlockSpec((tn, D), lambda n, b: (n, 0)),   # raw f32 W
            ],
            out_specs=pl.BlockSpec((tb, tn), lambda n, b: (b, n)),
            scratch_shapes=[pltpu.VMEM((tn, D), matmul_dtype)],
        ),
        compiler_params=pltpu.CompilerParams(
            # b is "arbitrary": the normalized-W scratch written at b == 0 is
            # consumed by later b steps of the same n tile.
            dimension_semantics=("parallel", "arbitrary"),
            vmem_limit_bytes=int(vmem_limit)),
        cost_estimate=cost,
    )(labels2d, xn, weight)

    if (B_pad, N_pad) != (B, N):
        out = out[:B, :N]
    return out


# ---------------------------------------------------------------------------
# Pure-JAX f32 reference mirroring the PyTorch module.
# ---------------------------------------------------------------------------
def _reference(x, gt_labels, weight, *, m=0.5, m3=0.0, s=64.0,
               ls_eps=0.0, easy_margin=False):
    xn = x / jnp.maximum(jnp.linalg.norm(x, axis=1, keepdims=True), 1e-12)
    wn = weight / jnp.maximum(jnp.linalg.norm(weight, axis=1, keepdims=True), 1e-12)
    cos_t = xn @ wn.T
    sin_t = jnp.sqrt(jnp.clip(1.0 - cos_t ** 2, 0.0, 1.0))
    cos_m2, sin_m2 = math.cos(m), math.sin(m)
    threshold = math.cos(math.pi - m)
    cos_tm = cos_t * cos_m2 - sin_t * sin_m2 - m3
    if easy_margin:
        cos_tm = jnp.where(cos_t > 0, cos_tm, cos_t)
    else:
        cos_tm = jnp.where(cos_t > threshold, cos_tm, cos_t - m3 - sin_t * m)
    one_hot = jax.nn.one_hot(gt_labels, weight.shape[0], dtype=jnp.float32)
    if ls_eps > 0:
        one_hot = (1 - ls_eps) * one_hot + ls_eps / weight.shape[0]
    return (one_hot * cos_tm + (1.0 - one_hot) * cos_t) * s


if __name__ == "__main__":
    key = jax.random.PRNGKey(0)
    kx, kw, kl = jax.random.split(key, 3)

    # --- Test 1: divisible shapes, small tile targets to exercise a 2x2 grid
    # (and the b==0 scratch reuse across the inner batch axis). ---
    B, in_features, out_features = 16, 32, 256
    x = jax.random.normal(kx, (B, in_features), dtype=jnp.float32)
    bound = math.sqrt(6.0 / (in_features + out_features))  # xavier_uniform
    weight = jax.random.uniform(kw, (out_features, in_features),
                                dtype=jnp.float32, minval=-bound, maxval=bound)
    gt_labels = jax.random.randint(kl, (B,), 0, out_features, dtype=jnp.int32)

    out = combined_margin(x, gt_labels, weight, tb_target=8, tn_target=128)
    out = jax.block_until_ready(out)
    ref = _reference(x, gt_labels, weight)
    assert out.shape == (B, out_features)
    # bf16 MXU introduces up to ~s * 2^-8 absolute error vs the f32 reference.
    assert jnp.allclose(out, ref, atol=0.35, rtol=0.0), \
        f"mismatch vs f32 reference: max abs diff {jnp.max(jnp.abs(out - ref))}"

    # --- Test 2: label smoothing + easy margin (dense epilogue path). ---
    out2 = combined_margin(x, gt_labels, weight, ls_eps=0.1, easy_margin=True,
                           tb_target=8, tn_target=128)
    out2 = jax.block_until_ready(out2)
    ref2 = _reference(x, gt_labels, weight, ls_eps=0.1, easy_margin=True)
    assert jnp.allclose(out2, ref2, atol=0.35, rtol=0.0), \
        f"mismatch (ls_eps/easy_margin): max abs diff {jnp.max(jnp.abs(out2 - ref2))}"

    # --- Test 3: non-divisible B / N to exercise the padding + slice path. ---
    B3, N3 = 10, 200
    x3 = jax.random.normal(kx, (B3, in_features), dtype=jnp.float32)
    w3 = jax.random.uniform(kw, (N3, in_features), dtype=jnp.float32,
                            minval=-bound, maxval=bound)
    l3 = jax.random.randint(kl, (B3,), 0, N3, dtype=jnp.int32)
    out3 = combined_margin(x3, l3, w3, tb_target=8, tn_target=128)
    out3 = jax.block_until_ready(out3)
    ref3 = _reference(x3, l3, w3)
    assert out3.shape == (B3, N3)
    assert jnp.allclose(out3, ref3, atol=0.35, rtol=0.0), \
        f"mismatch (padded shapes): max abs diff {jnp.max(jnp.abs(out3 - ref3))}"

    print("KERNEL_OK")
</pallas_src>

<mosaic_0001>
module attributes {stable_mosaic.version = 11 : i64} {
  func.func @_row_l2_normalize_kernel(%arg0: i32, %arg1: memref<16x32xf32, #tpu.memory_space<vmem>>, %arg2: memref<16x32xbf16, #tpu.memory_space<vmem>>) attributes {dimension_semantics = [#tpu.dimension_semantics<parallel>], iteration_bounds = array<i64: 1>, scalar_prefetch = 0 : i64, scratch_operands = 0 : i64, tpu.core_type = #tpu.core_type<tc>, window_params = [{transform_indices = @transform_0, window_bounds = array<i64: 16, 32>}, {transform_indices = @transform_1, window_bounds = array<i64: 16, 32>}]} {
    %c0 = arith.constant 0 : index
    %c0_0 = arith.constant 0 : index
    %0 = vector.load %arg1[%c0, %c0_0] : memref<16x32xf32, #tpu.memory_space<vmem>>, vector<16x32xf32>
    %1 = arith.mulf %0, %0 : vector<16x32xf32>
    %cst = arith.constant dense<0.000000e+00> : vector<16xf32>
    %2 = vector.multi_reduction <add>, %1, %cst [1] : vector<16x32xf32> to vector<16xf32>
    %3 = vector.shape_cast %2 : vector<16xf32> to vector<16x1xf32>
    %cst_1 = arith.constant 1.000000e-24 : f32
    %4 = vector.broadcast %cst_1 : f32 to vector<16x1xf32>
    %5 = arith.maximumf %3, %4 : vector<16x1xf32>
    %6 = math.rsqrt %5 : vector<16x1xf32>
    %7 = vector.broadcast %6 : vector<16x1xf32> to vector<16x32xf32>
    %8 = arith.mulf %0, %7 : vector<16x32xf32>
    %9 = arith.truncf %8 : vector<16x32xf32> to vector<16x32xbf16>
    %c0_2 = arith.constant 0 : index
    %c0_3 = arith.constant 0 : index
    %10 = vector.load %arg2[%c0_2, %c0_3] : memref<16x32xbf16, #tpu.memory_space<vmem>>, vector<16x32xbf16>
    tpu.vector_store %arg2[%c0_2, %c0_3], %9 {strides = array<i32>} : memref<16x32xbf16, #tpu.memory_space<vmem>>, vector<16x32xbf16>,
    return
  }
  func.func @transform_0(%arg0: i32) -> (i32, i32) {
    %c0_i32 = arith.constant 0 : i32
    %c0_i32_0 = arith.constant 0 : i32
    return %arg0, %c0_i32 : i32, i32
  }
  func.func @transform_1(%arg0: i32) -> (i32, i32) {
    %c0_i32 = arith.constant 0 : i32
    %c0_i32_0 = arith.constant 0 : i32
    return %arg0, %c0_i32 : i32, i32
  }
}

</mosaic_0001>

<llo_original>
// kernel: tpu_custom_call.1
$region0: #{tpu_custom_call.1}
  #allocation0 [shape = 'u32[]', space=smem, size = 0x4, offset = 0x4, fixed_abs, tag = 'smem constant byte address 0x4 - core index']
  #allocation1 [shape = 'u32[72,128]{1,0:T(1,128)}', space=vmem, size = 0x9000, scoped, tag = 'internal scratch']
  %s0 = inlined_call_operand.hbm [shape: f32[16,32], index: 0, kind: input, shape index: {}]
  %s1 = inlined_call_operand.hbm [shape: bf16[16,32], index: 1, kind: output, shape index: {}]
  %s2 = sld [smem:[#allocation0]]
  $region18: #{tpu_custom_call.1} parent=0
    _
  %s4 = ssub.s32 1, %s2
  %s5 = scalar_select 0, %s4, %s2
  $region1: #{tpu_custom_call.1} parent=0
    #allocation2 [shape = 'u8[8192]{0}', space=vmem, size = 0x2000, scoped, tag = 'input window, operand 0, single buffered']
    #allocation3 [shape = 's32[1]{0}', space=sflag, size = 0x4, scoped, tag = 'scoped memory for tpu_custom_call.1']
    #allocation4 [shape = 's32[1]{0}', space=sflag, size = 0x4, scoped, tag = 'scoped memory for tpu_custom_call.1']
    #allocation5 [shape = 'u8[4096]{0}', space=vmem, size = 0x1000, scoped, tag = 'output window, operand 0, single buffered']
    %6 = vsyncpa [#allocation3], 0
    %7 = vsyncpa [#allocation4], 0
    // Predicated region
    $region2: #{tpu_custom_call.1} parent=1 // pred_check
      _
    $region3: #{tpu_custom_call.1} parent=1 // pred_check_branch
      %9 = sbr.rel (0) target = $region5
    $region4: #{tpu_custom_call.1} parent=1 // pred_region
      %11 = vsyncadd [#allocation3], 0
      %s12 = sshll.u32 %s0, 4
      %s13 = int_to_ptr.hbm [resolvable:$true] %s12
      %s14 = sshll.u32 [#allocation2], 4
      %s15 = int_to_ptr.vmem [resolvable:$true] %s14
      %20 = dma.hbm_to_vmem [thread:$0]  %s13, 256, %s15, [#allocation3], 128, 128, 8
    $region5: #{tpu_custom_call.1} parent=1 // pred_fallthru
      _
    // Predicated region
    $region6: #{tpu_custom_call.1} parent=1 // pred_check
      _
    $region7: #{tpu_custom_call.1} parent=1 // pred_check_branch
      %22 = sbr.rel (0) target = $region9
    $region8: #{tpu_custom_call.1} parent=1 // pred_region
      %24 = dma.done [#allocation3], 256
    $region9: #{tpu_custom_call.1} parent=1 // pred_fallthru
      _
    %v25 = vld [vmem:[#allocation2] sm:$0xff]
    %v26 = vld [vmem:[#allocation2 + $0x8] sm:$0xff]
    %v27 = vmul.f32 %v25, %v25
    %v28 = vmul.f32 %v26, %v26
    %vm29 = vcmask 261120
    %v30 = vsel %vm29, %v27, 0.0
    %31 = vadd.xlane.f32.xlu0 %v30
    %v32 = vpop.xlane.xlu0 %31
    %v33 = vsel %vm29, %v28, 0.0
    %34 = vadd.xlane.f32.xlu0 %v33
    %v35 = vpop.xlane.xlu0 %34
    %v36 = vmax.f32 %v32, 1e-24
    %v37 = vmax.f32 %v35, 1e-24
    %v38 = vrsqrt.pop %v36
    %v39 = vmul.f32 %v38, %v36
    %v40 = vmul.f32 %v39, %v38
    %v41 = vmul.f32 0.5, %v40
    %v42 = vsub.f32 1.5, %v41
    %v43 = vmul.f32 %v38, %v42
    %vm44 = vweird.f32 %v36
    %vm45 = vweird.f32 %v38
    %vm46 = vmor %vm44, %vm45
    %v47 = vsel %vm46, %v38, %v43
    %v48 = vrsqrt.pop %v37
    %v49 = vmul.f32 %v48, %v37
    %v50 = vmul.f32 %v49, %v48
    %v51 = vmul.f32 0.5, %v50
    %v52 = vsub.f32 1.5, %v51
    %v53 = vmul.f32 %v48, %v52
    %vm54 = vweird.f32 %v37
    %vm55 = vweird.f32 %v48
    %vm56 = vmor %vm54, %vm55
    %v57 = vsel %vm56, %v48, %v53
    %v58 = vmul.f32 %v25, %v47
    %v59 = vmul.f32 %v26, %v57
    %v60 = vpack.c.bf16 %v58, %v58
    %v61 = vpack.c.bf16 %v59, %v59
    %vm62 = vcmask 257024
    %63 = vst.msk [vmem:[#allocation5] sm:$0xf] %vm62, %v60
    %64 = vst.msk [vmem:[#allocation5 + $0x4] sm:$0xf] %vm62, %v61
    // Predicated region
    $region10: #{tpu_custom_call.1} parent=1 // pred_check
      _
    $region11: #{tpu_custom_call.1} parent=1 // pred_check_branch
      %66 = sbr.rel (0) target = $region13
    $region12: #{tpu_custom_call.1} parent=1 // pred_region
      %68 = vsyncadd [#allocation4], 0
      %s69 = sshll.u32 [#allocation5], 4
      %s70 = int_to_ptr.vmem [resolvable:$true] %s69
      %s71 = sshll.u32 %s1, 4
      %s72 = int_to_ptr.hbm [resolvable:$true] %s71
      %77 = dma.vmem_to_hbm [thread:$0]  %s70, 128, %s72, [#allocation4], 64, 64, 4
    $region13: #{tpu_custom_call.1} parent=1 // pred_fallthru
      _
    // Predicated region
    $region14: #{tpu_custom_call.1} parent=1 // pred_check
      _
    $region15: #{tpu_custom_call.1} parent=1 // pred_check_branch
      %79 = sbr.rel (0) target = $region17
    $region16: #{tpu_custom_call.1} parent=1 // pred_region
      %81 = dma.done [#allocation4], 128
    $region17: #{tpu_custom_call.1} parent=1 // pred_fallthru
      _
    %82 = vsyncpa [#allocation3], 1
    %83 = vsyncpa [#allocation4], 1

</llo_original>
